<compile_context>
chip_gen: v7x
topology: tpu7x:2x2x1
jax: 0.10.0
libtpu: 0.0.40
codegen_flags: <defaults>
</compile_context>

<pallas_src>
import functools

import jax
import jax.numpy as jnp
from jax.experimental import pallas as pl
from jax.experimental.pallas import tpu as pltpu


def _round_up(x, m):
    return ((x + m - 1) // m) * m


def _vrnn_kernel(
    z_ref,         # (TM, Z)        latent z rows
    xoa_ref,       # (TM, O+A)      [encoded_obs | encoded_act] rows
    h_ref,         # (TM, Hp)       previous hidden state rows (padded)
    w_encz_ref,    # (Z, Hp)        encodeZ Linear weight, transposed, padded
    w_x3_ref,      # (O+A, 3Hp)     gate-stacked [obs|act] input weights
    w_z3_ref,      # (Hp, 3Hp)      gate-stacked encoded_Z input weights
    w_h3_ref,      # (Hp, 3Hp)      gate-stacked hidden weights
    b_encz_ref,    # (1, Hp)
    b_i3_ref,      # (1, 3Hp)       b_ih stacked [r|z|n]
    b_h3_ref,      # (1, 3Hp)       b_hh stacked [r|z|n]
    encz_out_ref,  # (TM, Hp)
    h_out_ref,     # (TM, Hp)
):
    f32 = jnp.float32
    cdt = w_encz_ref.dtype          # matmul operand dtype (bf16 or f32)
    Hp = h_ref.shape[-1]

    z = z_ref[...].astype(cdt)
    xoa = xoa_ref[...].astype(cdt)
    h = h_ref[...].astype(f32)

    # encodeZ: Linear(z_dim, h_dim) + ReLU (f32 accumulation on the MXU).
    enc_z = jnp.maximum(
        jnp.dot(z, w_encz_ref[...], preferred_element_type=f32)
        + b_encz_ref[...],
        0.0,
    )

    # Gate-stacked GRU projections: one 3Hp-wide result per operand family.
    # PyTorch:  gi = cat([obs, enc_z, act]) @ W_ih^T + b_ih
    #           gh = h @ W_hh^T + b_hh
    gi = (jnp.dot(xoa, w_x3_ref[...], preferred_element_type=f32)
          + jnp.dot(enc_z.astype(cdt), w_z3_ref[...], preferred_element_type=f32)
          + b_i3_ref[...])
    gh = (jnp.dot(h.astype(cdt), w_h3_ref[...], preferred_element_type=f32)
          + b_h3_ref[...])

    # Gate slices are lane-aligned (Hp % 128 == 0). PyTorch gate order: r, z, n.
    r = jax.nn.sigmoid(gi[:, :Hp] + gh[:, :Hp])
    u = jax.nn.sigmoid(gi[:, Hp:2 * Hp] + gh[:, Hp:2 * Hp])
    n = jnp.tanh(gi[:, 2 * Hp:] + r * gh[:, 2 * Hp:])
    h_new = n + u * (h - n)         # == (1 - u) * n + u * h_prev

    # Direct stores to two lane-dense outputs (no concat / temp slab).
    encz_out_ref[...] = enc_z.astype(encz_out_ref.dtype)
    h_out_ref[...] = h_new.astype(h_out_ref.dtype)


def prepare_vrnn_params(params, obs_dim, act_dim, matmul_dtype=jnp.bfloat16):
    """One-time weight prep (hoisted out of the per-step hot path).

    params (PyTorch layout):
      w_encz (H, Z), b_encz (H,), w_ih (3H, O+H+A), w_hh (3H, H),
      b_ih (3H,), b_hh (3H,).  GRU input column order is [obs | encZ | act].

    Weights are transposed, split per gate, stacked gate-major and zero-padded
    so every matmul result / gate slice / store in the kernel is 128-lane
    aligned (Hp = round_up(H, 128)).
    """
    H = params["w_hh"].shape[1]
    Hp = _round_up(H, 128)
    O, A = obs_dim, act_dim
    w_ih, w_hh = params["w_ih"], params["w_hh"]
    b_ih, b_hh = params["b_ih"], params["b_hh"]
    f32 = jnp.float32

    def pad_cols(x, width):
        return jnp.pad(x, ((0, 0), (0, width - x.shape[1])))

    def pad_to(x, shape):
        return jnp.pad(x, ((0, shape[0] - x.shape[0]),
                           (0, shape[1] - x.shape[1])))

    w_x_g, w_z_g, w_h_g, b_i_g, b_h_g = [], [], [], [], []
    for g in range(3):  # gate order r, z, n
        wg = w_ih[g * H:(g + 1) * H]                 # (H, O+H+A)
        w_obs = wg[:, :O]
        w_ez = wg[:, O:O + H]
        w_act = wg[:, O + H:O + H + A]
        w_x_g.append(pad_cols(jnp.concatenate([w_obs, w_act], axis=1).T, Hp))
        w_z_g.append(pad_to(w_ez.T, (Hp, Hp)))
        w_h_g.append(pad_to(w_hh[g * H:(g + 1) * H].T, (Hp, Hp)))
        b_i_g.append(pad_cols(b_ih[g * H:(g + 1) * H].reshape(1, H), Hp))
        b_h_g.append(pad_cols(b_hh[g * H:(g + 1) * H].reshape(1, H), Hp))

    return {
        "w_encz": pad_cols(params["w_encz"].T, Hp).astype(matmul_dtype),  # (Z, Hp)
        "w_x3": jnp.concatenate(w_x_g, axis=1).astype(matmul_dtype),      # (O+A, 3Hp)
        "w_z3": jnp.concatenate(w_z_g, axis=1).astype(matmul_dtype),      # (Hp, 3Hp)
        "w_h3": jnp.concatenate(w_h_g, axis=1).astype(matmul_dtype),      # (Hp, 3Hp)
        "b_encz": pad_cols(params["b_encz"].reshape(1, H), Hp).astype(f32),
        "b_i3": jnp.concatenate(b_i_g, axis=1).astype(f32),               # (1, 3Hp)
        "b_h3": jnp.concatenate(b_h_g, axis=1).astype(f32),               # (1, 3Hp)
    }


@functools.partial(jax.jit, static_argnames=("block_rows",))
def vrnn_deterministic_transition(z, encoded_observation, encoded_action,
                                  prev_h, prepared, *, block_rows=512):
    """z: (B, P, Z); encoded_observation: (B, P, O); encoded_action: (B, P, A);
    prev_h: (B, P, H); prepared: output of prepare_vrnn_params.
    Returns (encoded_Z, h), each (B, P, H) float32."""
    B, P, Z = z.shape
    O = encoded_observation.shape[-1]
    A = encoded_action.shape[-1]
    H = prev_h.shape[-1]
    Hp = prepared["w_z3"].shape[0]
    N = B * P

    z2 = z.reshape(N, Z)
    xoa2 = jnp.concatenate(
        [encoded_observation.reshape(N, O), encoded_action.reshape(N, A)],
        axis=-1)                                   # (N, O+A)
    h2 = prev_h.reshape(N, H).astype(jnp.float32)
    if Hp != H:                                    # static under jit
        h2 = jnp.pad(h2, ((0, 0), (0, Hp - H)))

    # Row tile: multiple of 8, sized against VMEM (smaller for wide H), and
    # capped so the grid has >= 2 steps whenever N allows it (lets "parallel"
    # shard across the 2 TensorCores on v7x).
    eff_rows = block_rows if Hp < 512 else min(block_rows, 256)
    if N <= 8:
        TM = N
    else:
        TM = min(eff_rows, _round_up((N + 1) // 2, 8))
    grid = (pl.cdiv(N, TM),)

    vmem = pltpu.MemorySpace.VMEM

    def row_spec(width):
        return pl.BlockSpec((TM, width), lambda i: (i, 0), memory_space=vmem)

    def const_spec(shape):
        nd = len(shape)
        return pl.BlockSpec(shape, lambda i, _nd=nd: (0,) * _nd,
                            memory_space=vmem)

    in_specs = [
        row_spec(Z),                        # z
        row_spec(O + A),                    # [obs | act]
        row_spec(Hp),                       # prev_h (padded)
        const_spec(prepared["w_encz"].shape),
        const_spec(prepared["w_x3"].shape),
        const_spec(prepared["w_z3"].shape),
        const_spec(prepared["w_h3"].shape),
        const_spec(prepared["b_encz"].shape),
        const_spec(prepared["b_i3"].shape),
        const_spec(prepared["b_h3"].shape),
    ]
    out_specs = (row_spec(Hp), row_spec(Hp))
    out_shape = (jax.ShapeDtypeStruct((N, Hp), jnp.float32),
                 jax.ShapeDtypeStruct((N, Hp), jnp.float32))

    # VMEM budget: double-buffered row blocks + (double-buffered) resident
    # weights + live gate temporaries, with headroom; clamped to 64 MiB so the
    # limit is legal on v7x and raises v5e's 16 MiB scoped default.
    # TODO(synk): single-buffer the constant weight specs (pl.Buffered(1)) once
    # verified on the target jax version to reclaim the duplicated weight copy.
    wbytes = jnp.dtype(prepared["w_z3"].dtype).itemsize
    in_blk = 2 * TM * (Z + O + A + Hp) * 4
    out_blk = 2 * 2 * TM * Hp * 4
    w_res = 2 * ((Z * Hp + (O + A) * 3 * Hp + 2 * Hp * 3 * Hp) * wbytes
                 + (Hp + 2 * 3 * Hp) * 4)
    tmp = (2 * TM * 3 * Hp + 8 * TM * Hp) * 4 + TM * (Z + O + A + 2 * Hp) * wbytes
    vmem_limit = int(1.5 * (in_blk + out_blk + w_res + tmp)) + (4 << 20)
    vmem_limit = max(16 << 20, min(vmem_limit, 64 << 20))

    flops = 2 * N * Hp * (Z + 3 * (O + A) + 6 * Hp) + 12 * N * Hp
    transcendentals = 3 * N * Hp
    bytes_accessed = (4 * N * (Z + O + A + 3 * Hp)
                      + (Z * Hp + 3 * Hp * (O + A + 2 * Hp)) * wbytes
                      + 7 * Hp * 4)

    enc_z, h_new = pl.pallas_call(
        _vrnn_kernel,
        out_shape=out_shape,
        grid=grid,
        in_specs=in_specs,
        out_specs=out_specs,
        compiler_params=pltpu.CompilerParams(
            dimension_semantics=("parallel",),
            vmem_limit_bytes=vmem_limit),
        cost_estimate=pl.CostEstimate(
            flops=flops,
            transcendentals=transcendentals,
            bytes_accessed=bytes_accessed),
    )(z2, xoa2, h2,
      prepared["w_encz"], prepared["w_x3"], prepared["w_z3"], prepared["w_h3"],
      prepared["b_encz"], prepared["b_i3"], prepared["b_h3"])

    if Hp != H:                                    # no-op when H % 128 == 0
        enc_z = enc_z[:, :H]
        h_new = h_new[:, :H]
    return enc_z.reshape(B, P, H), h_new.reshape(B, P, H)


def _reference(z, enc_obs, enc_act, prev_h, params):
    """Pure-JAX f32 reference mirroring the PyTorch forward."""
    B, P, Z = z.shape
    H = prev_h.shape[-1]
    N = B * P
    z2 = z.reshape(N, Z)
    enc_z = jax.nn.relu(z2 @ params["w_encz"].T + params["b_encz"])
    x = jnp.concatenate(
        [enc_obs.reshape(N, -1), enc_z, enc_act.reshape(N, -1)], axis=1)
    h = prev_h.reshape(N, H)
    gi = x @ params["w_ih"].T + params["b_ih"]
    gh = h @ params["w_hh"].T + params["b_hh"]
    r = jax.nn.sigmoid(gi[:, :H] + gh[:, :H])
    u = jax.nn.sigmoid(gi[:, H:2 * H] + gh[:, H:2 * H])
    n = jnp.tanh(gi[:, 2 * H:] + r * gh[:, 2 * H:])
    h_new = (1.0 - u) * n + u * h
    return enc_z.reshape(B, P, H), h_new.reshape(B, P, H)


if __name__ == "__main__":
    # TODO(synk): the PyTorch module mutates a latentState container in place;
    # here we simply return (encoded_Z, h) — the numerical forward is identical.
    B, P = 2, 4
    Z_DIM, OBS_DIM, ACT_DIM, H_DIM = 16, 32, 16, 32

    key = jax.random.PRNGKey(0)
    keys = jax.random.split(key, 10)

    z = jax.random.normal(keys[0], (B, P, Z_DIM), dtype=jnp.float32)
    encoded_observation = jax.random.normal(keys[1], (B, P, OBS_DIM), jnp.float32)
    encoded_action = jax.random.normal(keys[2], (B, P, ACT_DIM), jnp.float32)
    prev_h = jax.random.normal(keys[3], (B, P, H_DIM), jnp.float32)

    D_IN = H_DIM + OBS_DIM + ACT_DIM  # GRUCell input dim
    scale = 0.1
    params = {
        "w_encz": scale * jax.random.normal(keys[4], (H_DIM, Z_DIM), jnp.float32),
        "b_encz": scale * jax.random.normal(keys[5], (H_DIM,), jnp.float32),
        "w_ih": scale * jax.random.normal(keys[6], (3 * H_DIM, D_IN), jnp.float32),
        "w_hh": scale * jax.random.normal(keys[7], (3 * H_DIM, H_DIM), jnp.float32),
        "b_ih": scale * jax.random.normal(keys[8], (3 * H_DIM,), jnp.float32),
        "b_hh": scale * jax.random.normal(keys[9], (3 * H_DIM,), jnp.float32),
    }

    ref_enc_z, ref_h = _reference(z, encoded_observation, encoded_action,
                                  prev_h, params)

    # 1) f32-operand path: tight check against the reference.
    prep_f32 = prepare_vrnn_params(params, OBS_DIM, ACT_DIM,
                                   matmul_dtype=jnp.float32)
    enc_z_f32, h_f32 = vrnn_deterministic_transition(
        z, encoded_observation, encoded_action, prev_h, prep_f32)
    jax.block_until_ready((enc_z_f32, h_f32))
    assert jnp.allclose(enc_z_f32, ref_enc_z, atol=1e-5, rtol=1e-5)
    assert jnp.allclose(h_f32, ref_h, atol=1e-5, rtol=1e-5)

    # 2) bf16-operand path (default for v6e/v7x MXU throughput), f32 accumulate
    #    and f32 gate math; looser tolerance for the bf16 cast.
    prep_bf16 = prepare_vrnn_params(params, OBS_DIM, ACT_DIM,
                                    matmul_dtype=jnp.bfloat16)
    enc_z_bf, h_bf = vrnn_deterministic_transition(
        z, encoded_observation, encoded_action, prev_h, prep_bf16)
    jax.block_until_ready((enc_z_bf, h_bf))
    assert jnp.allclose(enc_z_bf, ref_enc_z, atol=1e-2, rtol=1e-2)
    assert jnp.allclose(h_bf, ref_h, atol=1e-2, rtol=1e-2)

    print("KERNEL_OK")
</pallas_src>

<mosaic_0001>
module attributes {stable_mosaic.version = 11 : i64} {
  func.func @_vrnn_kernel(%arg0: i32, %arg1: memref<8x16xf32, #tpu.memory_space<vmem>>, %arg2: memref<8x48xf32, #tpu.memory_space<vmem>>, %arg3: memref<8x128xf32, #tpu.memory_space<vmem>>, %arg4: memref<16x128xf32, #tpu.memory_space<vmem>>, %arg5: memref<48x384xf32, #tpu.memory_space<vmem>>, %arg6: memref<128x384xf32, #tpu.memory_space<vmem>>, %arg7: memref<128x384xf32, #tpu.memory_space<vmem>>, %arg8: memref<1x128xf32, #tpu.memory_space<vmem>>, %arg9: memref<1x384xf32, #tpu.memory_space<vmem>>, %arg10: memref<1x384xf32, #tpu.memory_space<vmem>>, %arg11: memref<8x128xf32, #tpu.memory_space<vmem>>, %arg12: memref<8x128xf32, #tpu.memory_space<vmem>>) attributes {dimension_semantics = [#tpu.dimension_semantics<parallel>], iteration_bounds = array<i64: 1>, scalar_prefetch = 0 : i64, scratch_operands = 0 : i64, tpu.core_type = #tpu.core_type<tc>, window_params = [{transform_indices = @transform_0, window_bounds = array<i64: 8, 16>}, {transform_indices = @transform_1, window_bounds = array<i64: 8, 48>}, {transform_indices = @transform_2, window_bounds = array<i64: 8, 128>}, {pipeline_mode = #tpu.pipeline_mode<synchronous>, transform_indices = @transform_3, window_bounds = array<i64: 16, 128>}, {pipeline_mode = #tpu.pipeline_mode<synchronous>, transform_indices = @transform_4, window_bounds = array<i64: 48, 384>}, {pipeline_mode = #tpu.pipeline_mode<synchronous>, transform_indices = @transform_5, window_bounds = array<i64: 128, 384>}, {pipeline_mode = #tpu.pipeline_mode<synchronous>, transform_indices = @transform_6, window_bounds = array<i64: 128, 384>}, {pipeline_mode = #tpu.pipeline_mode<synchronous>, transform_indices = @transform_7, window_bounds = array<i64: 1, 128>}, {pipeline_mode = #tpu.pipeline_mode<synchronous>, transform_indices = @transform_8, window_bounds = array<i64: 1, 384>}, {pipeline_mode = #tpu.pipeline_mode<synchronous>, transform_indices = @transform_9, window_bounds = array<i64: 1, 384>}, {transform_indices = @transform_10, window_bounds = array<i64: 8, 128>}, {transform_indices = @transform_11, window_bounds = array<i64: 8, 128>}]} {
    %c0 = arith.constant 0 : index
    %c0_0 = arith.constant 0 : index
    %0 = vector.load %arg1[%c0, %c0_0] : memref<8x16xf32, #tpu.memory_space<vmem>>, vector<8x16xf32>
    %c0_1 = arith.constant 0 : index
    %c0_2 = arith.constant 0 : index
    %1 = vector.load %arg2[%c0_1, %c0_2] : memref<8x48xf32, #tpu.memory_space<vmem>>, vector<8x48xf32>
    %c0_3 = arith.constant 0 : index
    %c0_4 = arith.constant 0 : index
    %2 = vector.load %arg3[%c0_3, %c0_4] : memref<8x128xf32, #tpu.memory_space<vmem>>, vector<8x128xf32>
    %c0_5 = arith.constant 0 : index
    %c0_6 = arith.constant 0 : index
    %3 = vector.load %arg4[%c0_5, %c0_6] : memref<16x128xf32, #tpu.memory_space<vmem>>, vector<16x128xf32>
    %cst = arith.constant dense<0.000000e+00> : vector<8x128xf32>
    %4 = tpu.matmul %0, %3, %cst {dimension_numbers = #tpu.dot_dimension_numbers<[1], [0], [0], [1], [0, 0, 1, 1], [], []>} : vector<8x16xf32>, vector<16x128xf32>, vector<8x128xf32> -> vector<8x128xf32>
    %c0_7 = arith.constant 0 : index
    %c0_8 = arith.constant 0 : index
    %5 = vector.load %arg8[%c0_7, %c0_8] : memref<1x128xf32, #tpu.memory_space<vmem>>, vector<1x128xf32>
    %6 = vector.broadcast %5 : vector<1x128xf32> to vector<8x128xf32>
    %7 = arith.addf %4, %6 : vector<8x128xf32>
    %cst_9 = arith.constant 0.000000e+00 : f32
    %8 = vector.broadcast %cst_9 : f32 to vector<8x128xf32>
    %9 = arith.maximumf %7, %8 : vector<8x128xf32>
    %c0_10 = arith.constant 0 : index
    %c0_11 = arith.constant 0 : index
    %10 = vector.load %arg5[%c0_10, %c0_11] : memref<48x384xf32, #tpu.memory_space<vmem>>, vector<48x384xf32>
    %cst_12 = arith.constant dense<0.000000e+00> : vector<8x384xf32>
    %11 = tpu.matmul %1, %10, %cst_12 {dimension_numbers = #tpu.dot_dimension_numbers<[1], [0], [0], [1], [0, 0, 1, 1], [], []>} : vector<8x48xf32>, vector<48x384xf32>, vector<8x384xf32> -> vector<8x384xf32>
    %c0_13 = arith.constant 0 : index
    %c0_14 = arith.constant 0 : index
    %12 = vector.load %arg6[%c0_13, %c0_14] : memref<128x384xf32, #tpu.memory_space<vmem>>, vector<128x384xf32>
    %cst_15 = arith.constant dense<0.000000e+00> : vector<8x384xf32>
    %13 = tpu.matmul %9, %12, %cst_15 {dimension_numbers = #tpu.dot_dimension_numbers<[1], [0], [0], [1], [0, 0, 1, 1], [], []>} : vector<8x128xf32>, vector<128x384xf32>, vector<8x384xf32> -> vector<8x384xf32>
    %14 = arith.addf %11, %13 : vector<8x384xf32>
    %c0_16 = arith.constant 0 : index
    %c0_17 = arith.constant 0 : index
    %15 = vector.load %arg9[%c0_16, %c0_17] : memref<1x384xf32, #tpu.memory_space<vmem>>, vector<1x384xf32>
    %16 = vector.broadcast %15 : vector<1x384xf32> to vector<8x384xf32>
    %17 = arith.addf %14, %16 : vector<8x384xf32>
    %c0_18 = arith.constant 0 : index
    %c0_19 = arith.constant 0 : index
    %18 = vector.load %arg7[%c0_18, %c0_19] : memref<128x384xf32, #tpu.memory_space<vmem>>, vector<128x384xf32>
    %cst_20 = arith.constant dense<0.000000e+00> : vector<8x384xf32>
    %19 = tpu.matmul %2, %18, %cst_20 {dimension_numbers = #tpu.dot_dimension_numbers<[1], [0], [0], [1], [0, 0, 1, 1], [], []>} : vector<8x128xf32>, vector<128x384xf32>, vector<8x384xf32> -> vector<8x384xf32>
    %c0_21 = arith.constant 0 : index
    %c0_22 = arith.constant 0 : index
    %20 = vector.load %arg10[%c0_21, %c0_22] : memref<1x384xf32, #tpu.memory_space<vmem>>, vector<1x384xf32>
    %21 = vector.broadcast %20 : vector<1x384xf32> to vector<8x384xf32>
    %22 = arith.addf %19, %21 : vector<8x384xf32>
    %23 = vector.extract_strided_slice %17 {offsets = [0, 0], sizes = [8, 128], strides = [1, 1]} : vector<8x384xf32> to vector<8x128xf32>
    %24 = vector.extract_strided_slice %22 {offsets = [0, 0], sizes = [8, 128], strides = [1, 1]} : vector<8x384xf32> to vector<8x128xf32>
    %25 = arith.addf %23, %24 : vector<8x128xf32>
    %26 = arith.negf %25 : vector<8x128xf32>
    %27 = math.exp %26 : vector<8x128xf32>
    %cst_23 = arith.constant 1.000000e+00 : f32
    %28 = vector.broadcast %cst_23 : f32 to vector<8x128xf32>
    %29 = arith.addf %28, %27 : vector<8x128xf32>
    %30 = arith.divf %28, %29 : vector<8x128xf32>
    %31 = vector.extract_strided_slice %17 {offsets = [0, 128], sizes = [8, 128], strides = [1, 1]} : vector<8x384xf32> to vector<8x128xf32>
    %32 = vector.extract_strided_slice %22 {offsets = [0, 128], sizes = [8, 128], strides = [1, 1]} : vector<8x384xf32> to vector<8x128xf32>
    %33 = arith.addf %31, %32 : vector<8x128xf32>
    %34 = arith.negf %33 : vector<8x128xf32>
    %35 = math.exp %34 : vector<8x128xf32>
    %cst_24 = arith.constant 1.000000e+00 : f32
    %36 = vector.broadcast %cst_24 : f32 to vector<8x128xf32>
    %37 = arith.addf %36, %35 : vector<8x128xf32>
    %38 = arith.divf %36, %37 : vector<8x128xf32>
    %39 = vector.extract_strided_slice %17 {offsets = [0, 256], sizes = [8, 128], strides = [1, 1]} : vector<8x384xf32> to vector<8x128xf32>
    %40 = vector.extract_strided_slice %22 {offsets = [0, 256], sizes = [8, 128], strides = [1, 1]} : vector<8x384xf32> to vector<8x128xf32>
    %41 = arith.mulf %30, %40 : vector<8x128xf32>
    %42 = arith.addf %39, %41 : vector<8x128xf32>
    %43 = math.tanh %42 : vector<8x128xf32>
    %44 = arith.subf %2, %43 : vector<8x128xf32>
    %45 = arith.mulf %38, %44 : vector<8x128xf32>
    %46 = arith.addf %43, %45 : vector<8x128xf32>
    %c0_25 = arith.constant 0 : index
    %c0_26 = arith.constant 0 : index
    %47 = vector.load %arg11[%c0_25, %c0_26] : memref<8x128xf32, #tpu.memory_space<vmem>>, vector<8x128xf32>
    tpu.vector_store %arg11[%c0_25, %c0_26], %9 {strides = array<i32>} : memref<8x128xf32, #tpu.memory_space<vmem>>, vector<8x128xf32>,
    %c0_27 = arith.constant 0 : index
    %c0_28 = arith.constant 0 : index
    %48 = vector.load %arg12[%c0_27, %c0_28] : memref<8x128xf32, #tpu.memory_space<vmem>>, vector<8x128xf32>
    tpu.vector_store %arg12[%c0_27, %c0_28], %46 {strides = array<i32>} : memref<8x128xf32, #tpu.memory_space<vmem>>, vector<8x128xf32>,
    return
  }
  func.func @transform_0(%arg0: i32) -> (i32, i32) {
    %c0_i32 = arith.constant 0 : i32
    %c0_i32_0 = arith.constant 0 : i32
    return %arg0, %c0_i32 : i32, i32
  }
  func.func @transform_1(%arg0: i32) -> (i32, i32) {
    %c0_i32 = arith.constant 0 : i32
    %c0_i32_0 = arith.constant 0 : i32
    return %arg0, %c0_i32 : i32, i32
  }
  func.func @transform_2(%arg0: i32) -> (i32, i32) {
    %c0_i32 = arith.constant 0 : i32
    %c0_i32_0 = arith.constant 0 : i32
    return %arg0, %c0_i32 : i32, i32
  }
  func.func @transform_3(%arg0: i32) -> (i32, i32) {
    %c0_i32 = arith.constant 0 : i32
    %c0_i32_0 = arith.constant 0 : i32
    %c0_i32_1 = arith.constant 0 : i32
    return %c0_i32, %c0_i32_0 : i32, i32
  }
  func.func @transform_4(%arg0: i32) -> (i32, i32) {
    %c0_i32 = arith.constant 0 : i32
    %c0_i32_0 = arith.constant 0 : i32
    %c0_i32_1 = arith.constant 0 : i32
    return %c0_i32, %c0_i32_0 : i32, i32
  }
  func.func @transform_5(%arg0: i32) -> (i32, i32) {
    %c0_i32 = arith.constant 0 : i32
    %c0_i32_0 = arith.constant 0 : i32
    %c0_i32_1 = arith.constant 0 : i32
    return %c0_i32, %c0_i32_0 : i32, i32
  }
  func.func @transform_6(%arg0: i32) -> (i32, i32) {
    %c0_i32 = arith.constant 0 : i32
    %c0_i32_0 = arith.constant 0 : i32
    %c0_i32_1 = arith.constant 0 : i32
    return %c0_i32, %c0_i32_0 : i32, i32
  }
  func.func @transform_7(%arg0: i32) -> (i32, i32) {
    %c0_i32 = arith.constant 0 : i32
    %c0_i32_0 = arith.constant 0 : i32
    %c0_i32_1 = arith.constant 0 : i32
    return %c0_i32, %c0_i32_0 : i32, i32
  }
  func.func @transform_8(%arg0: i32) -> (i32, i32) {
    %c0_i32 = arith.constant 0 : i32
    %c0_i32_0 = arith.constant 0 : i32
    %c0_i32_1 = arith.constant 0 : i32
    return %c0_i32, %c0_i32_0 : i32, i32
  }
  func.func @transform_9(%arg0: i32) -> (i32, i32) {
    %c0_i32 = arith.constant 0 : i32
    %c0_i32_0 = arith.constant 0 : i32
    %c0_i32_1 = arith.constant 0 : i32
    return %c0_i32, %c0_i32_0 : i32, i32
  }
  func.func @transform_10(%arg0: i32) -> (i32, i32) {
    %c0_i32 = arith.constant 0 : i32
    %c0_i32_0 = arith.constant 0 : i32
    return %arg0, %c0_i32 : i32, i32
  }
  func.func @transform_11(%arg0: i32) -> (i32, i32) {
    %c0_i32 = arith.constant 0 : i32
    %c0_i32_0 = arith.constant 0 : i32
    return %arg0, %c0_i32 : i32, i32
  }
}

</mosaic_0001>

<llo_original>
// kernel: vrnn_deterministic_transition.1
$region0: #{vrnn_deterministic_transition.1}
  #allocation0 [shape = 'u32[]', space=smem, size = 0x4, offset = 0x4, fixed_abs, tag = 'smem constant byte address 0x4 - core index']
  #allocation1 [shape = 'u32[144,128]{1,0:T(1,128)}', space=vmem, size = 0x12000, scoped, tag = 'internal scratch']
  %s0 = inlined_call_operand.vmem [shape: f32[8,16], index: 0, kind: input, shape index: {}]
  %s1 = inlined_call_operand.vmem [shape: f32[8,48], index: 1, kind: input, shape index: {}]
  %s2 = inlined_call_operand.vmem [shape: f32[8,128], index: 2, kind: input, shape index: {}]
  %s3 = inlined_call_operand.vmem [shape: f32[16,128], index: 3, kind: input, shape index: {}]
  %s4 = inlined_call_operand.hbm [shape: f32[48,384], index: 4, kind: input, shape index: {}]
  %s5 = inlined_call_operand.hbm [shape: f32[128,384], index: 5, kind: input, shape index: {}]
  %s6 = inlined_call_operand.hbm [shape: f32[128,384], index: 6, kind: input, shape index: {}]
  %s7 = inlined_call_operand.vmem [shape: f32[1,128], index: 7, kind: input, shape index: {}]
  %s8 = inlined_call_operand.vmem [shape: f32[1,384], index: 8, kind: input, shape index: {}]
  %s9 = inlined_call_operand.vmem [shape: f32[1,384], index: 9, kind: input, shape index: {}]
  %s10 = inlined_call_operand.hbm [shape: f32[8,128], index: 10, kind: output, shape index: {0}]
  %s11 = inlined_call_operand.hbm [shape: f32[8,128], index: 11, kind: output, shape index: {1}]
  %12 = xla_tuple %s10, %s11
  %s13 = sld [smem:[#allocation0]]
  $region70: #{vrnn_deterministic_transition.1} parent=0
    _
  %s15 = ssub.s32 1, %s13
  %s16 = scalar_select 0, %s15, %s13
  $region1: #{vrnn_deterministic_transition.1} parent=0
    #allocation2 [shape = 'u8[73728]{0}', space=vmem, size = 0x12000, scoped, tag = 'input window, operand 4, single buffered']
    #allocation3 [shape = 's32[1]{0}', space=sflag, size = 0x4, scoped, tag = 'scoped memory for vrnn_deterministic_transition.1']
    #allocation4 [shape = 's32[1]{0}', space=sflag, size = 0x4, scoped, tag = 'scoped memory for vrnn_deterministic_transition.1']
    #allocation5 [shape = 'u8[196608]{0}', space=vmem, size = 0x30000, scoped, tag = 'input window, operand 5, single buffered']
    #allocation6 [shape = 's32[1]{0}', space=sflag, size = 0x4, scoped, tag = 'scoped memory for vrnn_deterministic_transition.1']
    #allocation7 [shape = 'u8[196608]{0}', space=vmem, size = 0x30000, scoped, tag = 'input window, operand 6, single buffered']
    #allocation8 [shape = 'u8[4096]{0}', space=vmem, size = 0x1000, scoped, tag = 'output window, operand 0, single buffered']
    #allocation9 [shape = 'u8[4096]{0}', space=vmem, size = 0x1000, scoped, tag = 'output window, operand 1, single buffered']
    #allocation10 [shape = 's32[1]{0}', space=sflag, size = 0x4, scoped, tag = 'scoped memory for vrnn_deterministic_transition.1']
    %17 = vsyncpa [#allocation3], 0
    %18 = vsyncpa [#allocation6], 0
    %19 = vsyncpa [#allocation4], 0
    %20 = vsyncpa [#allocation10], 0
    // Predicated region
    $region2: #{vrnn_deterministic_transition.1} parent=1 // pred_check
      _
    $region3: #{vrnn_deterministic_transition.1} parent=1 // pred_check_branch
      %22 = sbr.rel (0) target = $region5
    $region4: #{vrnn_deterministic_transition.1} parent=1 // pred_region
      _
    $region5: #{vrnn_deterministic_transition.1} parent=1 // pred_fallthru
      _
    // Predicated region
    $region6: #{vrnn_deterministic_transition.1} parent=1 // pred_check
      _
    $region7: #{vrnn_deterministic_transition.1} parent=1 // pred_check_branch
      %24 = sbr.rel (0) target = $region9
    $region8: #{vrnn_deterministic_transition.1} parent=1 // pred_region
      _
    $region9: #{vrnn_deterministic_transition.1} parent=1 // pred_fallthru
      _
    // Predicated region
    $region10: #{vrnn_deterministic_transition.1} parent=1 // pred_check
      _
    $region11: #{vrnn_deterministic_transition.1} parent=1 // pred_check_branch
      %26 = sbr.rel (0) target = $region13
    $region12: #{vrnn_deterministic_transition.1} parent=1 // pred_region
      _
    $region13: #{vrnn_deterministic_transition.1} parent=1 // pred_fallthru
      _
    // Predicated region
    $region14: #{vrnn_deterministic_transition.1} parent=1 // pred_check
      _
    $region15: #{vrnn_deterministic_transition.1} parent=1 // pred_check_branch
      %28 = sbr.rel (0) target = $region17
    $region16: #{vrnn_deterministic_transition.1} parent=1 // pred_region
      _
    $region17: #{vrnn_deterministic_transition.1} parent=1 // pred_fallthru
      _
    // Predicated region
    $region18: #{vrnn_deterministic_transition.1} parent=1 // pred_check
      _
    $region19: #{vrnn_deterministic_transition.1} parent=1 // pred_check_branch
      %30 = sbr.rel (0) target = $region21
    $region20: #{vrnn_deterministic_transition.1} parent=1 // pred_region
      %s32 = ssub.s32 2304, 2304
      %33 = vsyncadd [#allocation3], %s32
      %s34 = sshll.u32 [#allocation2], 4
      %s35 = int_to_ptr.vmem [resolvable:$true] %s34
      %40 = dma.hbm_to_vmem [thread:$0]  %s4, 2304, %s35, [#allocation3], 384, 384, 24
    $region21: #{vrnn_deterministic_transition.1} parent=1 // pred_fallthru
      _
    // Predicated region
    $region22: #{vrnn_deterministic_transition.1} parent=1 // pred_check
      _
    $region23: #{vrnn_deterministic_transition.1} parent=1 // pred_check_branch
      %42 = sbr.rel (0) target = $region25
    $region24: #{vrnn_deterministic_transition.1} parent=1 // pred_region
      %s44 = ssub.s32 6144, 6144
      %45 = vsyncadd [#allocation6], %s44
      %s46 = sshll.u32 [#allocation5], 4
      %s47 = int_to_ptr.vmem [resolvable:$true] %s46
      %52 = dma.hbm_to_vmem [thread:$0]  %s5, 6144, %s47, [#allocation6], 384, 384, 24
    $region25: #{vrnn_deterministic_transition.1} parent=1 // pred_fallthru
      _
    // Predicated region
    $region26: #{vrnn_deterministic_transition.1} parent=1 // pred_check
      _
    $region27: #{vrnn_deterministic_transition.1} parent=1 // pred_check_branch
      %54 = sbr.rel (0) target = $region29
    $region28: #{vrnn_deterministic_transition.1} parent=1 // pred_region
      %s56 = ssub.s32 6144, 6144
      %57 = vsyncadd [#allocation6], %s56
      %s58 = sshll.u32 [#allocation7], 4
      %s59 = int_to_ptr.vmem [resolvable:$true] %s58
      %64 = dma.hbm_to_vmem [thread:$0]  %s6, 6144, %s59, [#allocation6], 384, 384, 24
    $region29: #{vrnn_deterministic_transition.1} parent=1 // pred_fallthru
      _
    // Predicated region
    $region30: #{vrnn_deterministic_transition.1} parent=1 // pred_check
      _
    $region31: #{vrnn_deterministic_transition.1} parent=1 // pred_check_branch
      %66 = sbr.rel (0) target = $region33
    $region32: #{vrnn_deterministic_transition.1} parent=1 // pred_region
      _
    $region33: #{vrnn_deterministic_transition.1} parent=1 // pred_fallthru
      _
    // Predicated region
    $region34: #{vrnn_deterministic_transition.1} parent=1 // pred_check
      _
    $region35: #{vrnn_deterministic_transition.1} parent=1 // pred_check_branch
      %68 = sbr.rel (0) target = $region37
    $region36: #{vrnn_deterministic_transition.1} parent=1 // pred_region
      _
    $region37: #{vrnn_deterministic_transition.1} parent=1 // pred_fallthru
      _
    // Predicated region
    $region38: #{vrnn_deterministic_transition.1} parent=1 // pred_check
      _
    $region39: #{vrnn_deterministic_transition.1} parent=1 // pred_check_branch
      %70 = sbr.rel (0) target = $region41
    $region40: #{vrnn_deterministic_transition.1} parent=1 // pred_region
      _
    $region41: #{vrnn_deterministic_transition.1} parent=1 // pred_fallthru
      _
    // Predicated region
    $region42: #{vrnn_deterministic_transition.1} parent=1 // pred_check
      _
    $region43: #{vrnn_deterministic_transition.1} parent=1 // pred_check_branch
      %72 = sbr.rel (0) target = $region45
    $region44: #{vrnn_deterministic_transition.1} parent=1 // pred_region
      %73 = dma.done [#allocation3], 2304
    $region45: #{vrnn_deterministic_transition.1} parent=1 // pred_fallthru
      _
    // Predicated region
    $region46: #{vrnn_deterministic_transition.1} parent=1 // pred_check
      _
    $region47: #{vrnn_deterministic_transition.1} parent=1 // pred_check_branch
      %75 = sbr.rel (0) target = $region49
    $region48: #{vrnn_deterministic_transition.1} parent=1 // pred_region
      %76 = dma.done [#allocation6], 6144
    $region49: #{vrnn_deterministic_transition.1} parent=1 // pred_fallthru
      _
    // Predicated region
    $region50: #{vrnn_deterministic_transition.1} parent=1 // pred_check
      _
    $region51: #{vrnn_deterministic_transition.1} parent=1 // pred_check_branch
      %78 = sbr.rel (0) target = $region53
    $region52: #{vrnn_deterministic_transition.1} parent=1 // pred_region
      %79 = dma.done [#allocation6], 6144
    $region53: #{vrnn_deterministic_transition.1} parent=1 // pred_fallthru
      _
    %v80 = vld [vmem:[%s0] sm:$0xff]
    %v81 = vld [vmem:[%s1] sm:$0xff]
    %v82 = vld [vmem:[%s2] sm:$0xff]
    %v83 = vld [vmem:[%s3] sm:$0xff]
    %v84 = vld [vmem:[%s3 + $0x8] sm:$0xff]
    %v85 = vld [vmem:[%s7] sm:$0x1]
    %v87 = vlaneseq
    %v88 = vshrl.u32 %v87, 7
    %v89 = vsub.s32 0, %v88
    %v90 = vrot.slane %v85, %v89
    %vm92 = vcmask 130048
    %v94 = vsel %vm92, %v80, 0
    %96 = vmatprep.subr.mxu0 0.0
    %97 = vmatpush1.msra.mxu0 %v83
    %98 = vmatprep.subr.mxu0 0.0
    %99 = vmatpush1.msra.mxu0 %v84
    %100 = vmatprep.subr.mxu0 0.0
    %101 = vmatpush1.msra.mxu0 0.0
    %102 = vmatprep.subr.mxu0 0.0
    %103 = vmatpush1.msra.mxu0 0.0
    %104 = vmatprep.subr.mxu0 0.0
    %105 = vmatpush1.msra.mxu0 0.0
    %106 = vmatprep.subr.mxu0 0.0
    %107 = vmatpush1.msra.mxu0 0.0
    %108 = vmatprep.subr.mxu0 0.0
    %109 = vmatpush1.msra.mxu0 0.0
    %110 = vmatprep.subr.mxu0 0.0
    %111 = vmatpush1.msra.mxu0 0.0
    %112 = vmatprep.subr.mxu0 0.0
    %113 = vmatpush1.msra.mxu0 0.0
    %114 = vmatprep.subr.mxu0 0.0
    %115 = vmatpush1.msra.mxu0 0.0
    %116 = vmatprep.subr.mxu0 0.0
    %117 = vmatpush1.msra.mxu0 0.0
    %118 = vmatprep.subr.mxu0 0.0
    %119 = vmatpush1.msra.mxu0 0.0
    %120 = vmatprep.subr.mxu0 0.0
    %121 = vmatpush1.msra.mxu0 0.0
    %122 = vmatprep.subr.mxu0 0.0
    %123 = vmatpush1.msra.mxu0 0.0
    %124 = vmatprep.subr.mxu0 0.0
    %125 = vmatpush1.msra.mxu0 0.0
    %126 = vmatprep.subr.mxu0 0.0
    %127 = vmatpush1.msra.mxu0 0.0
    %128 = vmatprep.subr.mxu0 0.0
    %129 = vmatpush1.msra.mxu0 0.0
    %130 = vmatprep.subr.mxu0 0.0
    %131 = vmatpush1.msra.mxu0 0.0
    %132 = vmatprep.subr.mxu0 0.0
    %133 = vmatpush1.msra.mxu0 0.0
    %134 = vmatprep.subr.mxu0 0.0
    %135 = vmatpush1.msra.mxu0 0.0
    %136 = vmatprep.subr.mxu0 0.0
    %137 = vmatpush1.msra.mxu0 0.0
    %138 = vmatprep.subr.mxu0 0.0
    %139 = vmatpush1.msra.mxu0 0.0
    %140 = vmatprep.subr.mxu0 0.0
    %141 = vmatpush1.msra.mxu0 0.0
    %142 = vmatprep.subr.mxu0 0.0
    %143 = vmatpush1.msra.mxu0 0.0
    %144 = vmatprep.subr.mxu0 0.0
    %145 = vmatpush1.msra.mxu0 0.0
    %146 = vmatprep.subr.mxu0 0.0
    %147 = vmatpush1.msra.mxu0 0.0
    %148 = vmatprep.subr.mxu0 0.0
    %149 = vmatpush1.msra.mxu0 0.0
    %150 = vmatprep.subr.mxu0 0.0
    %151 = vmatpush1.msra.mxu0 0.0
    %152 = vmatprep.subr.mxu0 0.0
    %153 = vmatpush1.msra.mxu0 0.0
    %154 = vmatprep.subr.mxu0 0.0
    %155 = vmatpush1.msra.mxu0 0.0
    %156 = vmatprep.subr.mxu0 0.0
    %157 = vmatpush1.msra.mxu0 0.0
    %158 = vmatprep.subr.mxu0 0.0
    %159 = vmatpush1.msra.mxu0 0.0
    %160 = vmatprep.mubr.f32.mxu0 0.0
    %161 = vmatmul.mubr.f32.gmra.mrb[0].mxu0 %v94
    %v162 = vpop.f32.mrb[0].mxu0
    %v163 = vadd.f32 %v90, %v162
    %v164 = vpop.f32.mrb[0].mxu0
    %165 = vdwg.mxu0
    %v166 = vmax.f32 %v163, 0.0
    %v167 = vld [vmem:[#allocation2] sm:$0xff]
    %v168 = vld [vmem:[#allocation2 + $0x8] sm:$0xff]
    %v169 = vld [vmem:[#allocation2 + $0x10] sm:$0xff]
    %v170 = vld [vmem:[#allocation2 + $0x18] sm:$0xff]
    %v171 = vld [vmem:[#allocation2 + $0x20] sm:$0xff]
    %v172 = vld [vmem:[#allocation2 + $0x28] sm:$0xff]
    %v173 = vld [vmem:[#allocation2 + $0x30] sm:$0xff]
    %v174 = vld [vmem:[#allocation2 + $0x38] sm:$0xff]
    %v175 = vld [vmem:[#allocation2 + $0x40] sm:$0xff]
    %v176 = vld [vmem:[#allocation2 + $0x48] sm:$0xff]
    %v177 = vld [vmem:[#allocation2 + $0x50] sm:$0xff]
    %v178 = vld [vmem:[#allocation2 + $0x58] sm:$0xff]
    %v179 = vld [vmem:[#allocation2 + $0x60] sm:$0xff]
    %v180 = vld [vmem:[#allocation2 + $0x68] sm:$0xff]
    %v181 = vld [vmem:[#allocation2 + $0x70] sm:$0xff]
    %v182 = vld [vmem:[#allocation2 + $0x78] sm:$0xff]
    %v183 = vld [vmem:[#allocation2 + $0x80] sm:$0xff]
    %v184 = vld [vmem:[#allocation2 + $0x88] sm:$0xff]
    %v185 = vld [vmem:[#allocation5] sm:$0xff]
    %v186 = vld [vmem:[#allocation5 + $0x8] sm:$0xff]
    %v187 = vld [vmem:[#allocation5 + $0x10] sm:$0xff]
    %v188 = vld [vmem:[#allocation5 + $0x18] sm:$0xff]
    %v189 = vld [vmem:[#allocation5 + $0x20] sm:$0xff]
    %v190 = vld [vmem:[#allocation5 + $0x28] sm:$0xff]
    %v191 = vld [vmem:[#allocation5 + $0x30] sm:$0xff]
    %v192 = vld [vmem:[#allocation5 + $0x38] sm:$0xff]
    %v193 = vld [vmem:[#allocation5 + $0x40] sm:$0xff]
    %v194 = vld [vmem:[#allocation5 + $0x48] sm:$0xff]
    %v195 = vld [vmem:[#allocation5 + $0x50] sm:$0xff]
    %v196 = vld [vmem:[#allocation5 + $0x58] sm:$0xff]
    %v197 = vld [vmem:[#allocation5 + $0x60] sm:$0xff]
    %v198 = vld [vmem:[#allocation5 + $0x68] sm:$0xff]
    %v199 = vld [vmem:[#allocation5 + $0x70] sm:$0xff]
    %v200 = vld [vmem:[#allocation5 + $0x78] sm:$0xff]
    %v201 = vld [vmem:[#allocation5 + $0x80] sm:$0xff]
    %v202 = vld [vmem:[#allocation5 + $0x88] sm:$0xff]
    %v203 = vld [vmem:[#allocation5 + $0x90] sm:$0xff]
    %v204 = vld [vmem:[#allocation5 + $0x98] sm:$0xff]
    %v205 = vld [vmem:[#allocation5 + $0xa0] sm:$0xff]
    %v206 = vld [vmem:[#allocation5 + $0xa8] sm:$0xff]
    %v207 = vld [vmem:[#allocation5 + $0xb0] sm:$0xff]
    %v208 = vld [vmem:[#allocation5 + $0xb8] sm:$0xff]
    %v209 = vld [vmem:[#allocation5 + $0xc0] sm:$0xff]
    %v210 = vld [vmem:[#allocation5 + $0xc8] sm:$0xff]
    %v211 = vld [vmem:[#allocation5 + $0xd0] sm:$0xff]
    %v212 = vld [vmem:[#allocation5 + $0xd8] sm:$0xff]
    %v213 = vld [vmem:[#allocation5 + $0xe0] sm:$0xff]
    %v214 = vld [vmem:[#allocation5 + $0xe8] sm:$0xff]
    %v215 = vld [vmem:[#allocation5 + $0xf0] sm:$0xff]
    %v216 = vld [vmem:[#allocation5 + $0xf8] sm:$0xff]
    %v217 = vld [vmem:[#allocation5 + $0x100] sm:$0xff]
    %v218 = vld [vmem:[#allocation5 + $0x108] sm:$0xff]
    %v219 = vld [vmem:[#allocation5 + $0x110] sm:$0xff]
    %v220 = vld [vmem:[#allocation5 + $0x118] sm:$0xff]
    %v221 = vld [vmem:[#allocation5 + $0x120] sm:$0xff]
    %v222 = vld [vmem:[#allocation5 + $0x128] sm:$0xff]
    %v223 = vld [vmem:[#allocation5 + $0x130] sm:$0xff]
    %v224 = vld [vmem:[#allocation5 + $0x138] sm:$0xff]
    %v225 = vld [vmem:[#allocation5 + $0x140] sm:$0xff]
    %v226 = vld [vmem:[#allocation5 + $0x148] sm:$0xff]
    %v227 = vld [vmem:[#allocation5 + $0x150] sm:$0xff]
    %v228 = vld [vmem:[#allocation5 + $0x158] sm:$0xff]
    %v229 = vld [vmem:[#allocation5 + $0x160] sm:$0xff]
    %v230 = vld [vmem:[#allocation5 + $0x168] sm:$0xff]
    %v231 = vld [vmem:[#allocation5 + $0x170] sm:$0xff]
    %v232 = vld [vmem:[#allocation5 + $0x178] sm:$0xff]
    %233 = vmatprep.subr.mxu0 %v186
    %234 = vmatpush1.msra.mxu0 %v185
    %235 = vmatprep.subr.mxu0 %v189
    %236 = vmatpush1.msra.mxu0 %v188
    %237 = vmatprep.subr.mxu0 %v192
    %238 = vmatpush1.msra.mxu0 %v191
    %239 = vmatprep.subr.mxu0 %v195
    %240 = vmatpush1.msra.mxu0 %v194
    %241 = vmatprep.subr.mxu0 %v198
    %242 = vmatpush1.msra.mxu0 %v197
    %243 = vmatprep.subr.mxu0 %v201
    %244 = vmatpush1.msra.mxu0 %v200
    %245 = vmatprep.subr.mxu0 %v204
    %246 = vmatpush1.msra.mxu0 %v203
    %247 = vmatprep.subr.mxu0 %v207
    %248 = vmatpush1.msra.mxu0 %v206
    %249 = vmatprep.subr.mxu0 %v210
    %250 = vmatpush1.msra.mxu0 %v209
    %251 = vmatprep.subr.mxu0 %v213
    %252 = vmatpush1.msra.mxu0 %v212
    %253 = vmatprep.subr.mxu0 %v216
    %254 = vmatpush1.msra.mxu0 %v215
    %255 = vmatprep.subr.mxu0 %v219
    %256 = vmatpush1.msra.mxu0 %v218
    %257 = vmatprep.subr.mxu0 %v222
    %258 = vmatpush1.msra.mxu0 %v221
    %259 = vmatprep.subr.mxu0 %v225
    %260 = vmatpush1.msra.mxu0 %v224
    %261 = vmatprep.subr.mxu0 %v228
    %262 = vmatpush1.msra.mxu0 %v227
    %263 = vmatprep.subr.mxu0 %v231
    %264 = vmatpush1.msra.mxu0 %v230
    %265 = vmatprep.subr.mxu0 0.0
    %266 = vmatpush1.msra.mxu0 0.0
    %267 = vmatprep.subr.mxu0 0.0
    %268 = vmatpush1.msra.mxu0 0.0
    %269 = vmatprep.subr.mxu0 0.0
    %270 = vmatpush1.msra.mxu0 0.0
    %271 = vmatprep.subr.mxu0 0.0
    %272 = vmatpush1.msra.mxu0 0.0
    %273 = vmatprep.subr.mxu0 0.0
    %274 = vmatpush1.msra.mxu0 0.0
    %275 = vmatprep.subr.mxu0 0.0
    %276 = vmatpush1.msra.mxu0 0.0
    %277 = vmatprep.subr.mxu0 0.0
    %278 = vmatpush1.msra.mxu0 0.0
    %279 = vmatprep.subr.mxu0 0.0
    %280 = vmatpush1.msra.mxu0 0.0
    %281 = vmatprep.subr.mxu0 0.0
    %282 = vmatpush1.msra.mxu0 0.0
    %283 = vmatprep.subr.mxu0 0.0
    %284 = vmatpush1.msra.mxu0 0.0
    %285 = vmatprep.subr.mxu0 0.0
    %286 = vmatpush1.msra.mxu0 0.0
    %287 = vmatprep.subr.mxu0 0.0
    %288 = vmatpush1.msra.mxu0 0.0
    %289 = vmatprep.subr.mxu0 0.0
    %290 = vmatpush1.msra.mxu0 0.0
    %291 = vmatprep.subr.mxu0 0.0
    %292 = vmatpush1.msra.mxu0 0.0
    %293 = vmatprep.subr.mxu0 0.0
    %294 = vmatpush1.msra.mxu0 0.0
    %295 = vmatprep.subr.mxu0 0.0
    %296 = vmatpush1.msra.mxu0 0.0
    %297 = vmatprep.mubr.f32.mxu0 0.0
    %298 = vmatmul.mubr.f32.gmra.mrb[0].mxu0 %v166
    %v299 = vpop.f32.mrb[0].mxu0
    %v300 = vadd.f32 0.0, %v299
    %v301 = vpop.f32.mrb[0].mxu0
    %v302 = vadd.f32 0.0, %v301
    %303 = vdwg.mxu0
    %304 = vmatprep.subr.mxu0 0.0
    %305 = vmatpush1.msra.mxu0 %v187
    %306 = vmatprep.subr.mxu0 0.0
    %307 = vmatpush1.msra.mxu0 %v190
    %308 = vmatprep.subr.mxu0 0.0
    %309 = vmatpush1.msra.mxu0 %v193
    %310 = vmatprep.subr.mxu0 0.0
    %311 = vmatpush1.msra.mxu0 %v196
    %312 = vmatprep.subr.mxu0 0.0
    %313 = vmatpush1.msra.mxu0 %v199
    %314 = vmatprep.subr.mxu0 0.0
    %315 = vmatpush1.msra.mxu0 %v202
    %316 = vmatprep.subr.mxu0 0.0
    %317 = vmatpush1.msra.mxu0 %v205
    %318 = vmatprep.subr.mxu0 0.0
    %319 = vmatpush1.msra.mxu0 %v208
    %320 = vmatprep.subr.mxu0 0.0
    %321 = vmatpush1.msra.mxu0 %v211
    %322 = vmatprep.subr.mxu0 0.0
    %323 = vmatpush1.msra.mxu0 %v214
    %324 = vmatprep.subr.mxu0 0.0
    %325 = vmatpush1.msra.mxu0 %v217
    %326 = vmatprep.subr.mxu0 0.0
    %327 = vmatpush1.msra.mxu0 %v220
    %328 = vmatprep.subr.mxu0 0.0
    %329 = vmatpush1.msra.mxu0 %v223
    %330 = vmatprep.subr.mxu0 0.0
    %331 = vmatpush1.msra.mxu0 %v226
    %332 = vmatprep.subr.mxu0 0.0
    %333 = vmatpush1.msra.mxu0 %v229
    %334 = vmatprep.subr.mxu0 0.0
    %335 = vmatpush1.msra.mxu0 %v232
    %336 = vmatprep.subr.mxu0 0.0
    %337 = vmatpush1.msra.mxu0 0.0
    %338 = vmatprep.subr.mxu0 0.0
    %339 = vmatpush1.msra.mxu0 0.0
    %340 = vmatprep.subr.mxu0 0.0
    %341 = vmatpush1.msra.mxu0 0.0
    %342 = vmatprep.subr.mxu0 0.0
    %343 = vmatpush1.msra.mxu0 0.0
    %344 = vmatprep.subr.mxu0 0.0
    %345 = vmatpush1.msra.mxu0 0.0
    %346 = vmatprep.subr.mxu0 0.0
    %347 = vmatpush1.msra.mxu0 0.0
    %348 = vmatprep.subr.mxu0 0.0
    %349 = vmatpush1.msra.mxu0 0.0
    %350 = vmatprep.subr.mxu0 0.0
    %351 = vmatpush1.msra.mxu0 0.0
    %352 = vmatprep.subr.mxu0 0.0
    %353 = vmatpush1.msra.mxu0 0.0
    %354 = vmatprep.subr.mxu0 0.0
    %355 = vmatpush1.msra.mxu0 0.0
    %356 = vmatprep.subr.mxu0 0.0
    %357 = vmatpush1.msra.mxu0 0.0
    %358 = vmatprep.subr.mxu0 0.0
    %359 = vmatpush1.msra.mxu0 0.0
    %360 = vmatprep.subr.mxu0 0.0
    %361 = vmatpush1.msra.mxu0 0.0
    %362 = vmatprep.subr.mxu0 0.0
    %363 = vmatpush1.msra.mxu0 0.0
    %364 = vmatprep.subr.mxu0 0.0
    %365 = vmatpush1.msra.mxu0 0.0
    %366 = vmatprep.subr.mxu0 0.0
    %367 = vmatpush1.msra.mxu0 0.0
    %368 = vmatprep.mubr.f32.mxu0 0.0
    %369 = vmatmul.mubr.f32.gmra.mrb[0].mxu0 %v166
    %v370 = vpop.f32.mrb[0].mxu0
    %v371 = vadd.f32 0.0, %v370
    %v372 = vpop.f32.mrb[0].mxu0
    %373 = vdwg.mxu0
    %vm374 = vcmask 392192
    %v376 = vsel %vm374, %v81, 0
    %378 = vmatprep.subr.mxu0 %v168
    %379 = vmatpush1.msra.mxu0 %v167
    %380 = vmatprep.subr.mxu0 %v171
    %381 = vmatpush1.msra.mxu0 %v170
    %382 = vmatprep.subr.mxu0 %v174
    %383 = vmatpush1.msra.mxu0 %v173
    %384 = vmatprep.subr.mxu0 %v177
    %385 = vmatpush1.msra.mxu0 %v176
    %386 = vmatprep.subr.mxu0 %v180
    %387 = vmatpush1.msra.mxu0 %v179
    %388 = vmatprep.subr.mxu0 %v183
    %389 = vmatpush1.msra.mxu0 %v182
    %390 = vmatprep.subr.mxu0 0.0
    %391 = vmatpush1.msra.mxu0 0.0
    %392 = vmatprep.subr.mxu0 0.0
    %393 = vmatpush1.msra.mxu0 0.0
    %394 = vmatprep.subr.mxu0 0.0
    %395 = vmatpush1.msra.mxu0 0.0
    %396 = vmatprep.subr.mxu0 0.0
    %397 = vmatpush1.msra.mxu0 0.0
    %398 = vmatprep.subr.mxu0 0.0
    %399 = vmatpush1.msra.mxu0 0.0
    %400 = vmatprep.subr.mxu0 0.0
    %401 = vmatpush1.msra.mxu0 0.0
    %402 = vmatprep.subr.mxu0 0.0
    %403 = vmatpush1.msra.mxu0 0.0
    %404 = vmatprep.subr.mxu0 0.0
    %405 = vmatpush1.msra.mxu0 0.0
    %406 = vmatprep.subr.mxu0 0.0
    %407 = vmatpush1.msra.mxu0 0.0
    %408 = vmatprep.subr.mxu0 0.0
    %409 = vmatpush1.msra.mxu0 0.0
    %410 = vmatprep.subr.mxu0 0.0
    %411 = vmatpush1.msra.mxu0 0.0
    %412 = vmatprep.subr.mxu0 0.0
    %413 = vmatpush1.msra.mxu0 0.0
    %414 = vmatprep.subr.mxu0 0.0
    %415 = vmatpush1.msra.mxu0 0.0
    %416 = vmatprep.subr.mxu0 0.0
    %417 = vmatpush1.msra.mxu0 0.0
    %418 = vmatprep.subr.mxu0 0.0
    %419 = vmatpush1.msra.mxu0 0.0
    %420 = vmatprep.subr.mxu0 0.0
    %421 = vmatpush1.msra.mxu0 0.0
    %422 = vmatprep.subr.mxu0 0.0
    %423 = vmatpush1.msra.mxu0 0.0
    %424 = vmatprep.subr.mxu0 0.0
    %425 = vmatpush1.msra.mxu0 0.0
    %426 = vmatprep.subr.mxu0 0.0
    %427 = vmatpush1.msra.mxu0 0.0
    %428 = vmatprep.subr.mxu0 0.0
    %429 = vmatpush1.msra.mxu0 0.0
    %430 = vmatprep.subr.mxu0 0.0
    %431 = vmatpush1.msra.mxu0 0.0
    %432 = vmatprep.subr.mxu0 0.0
    %433 = vmatpush1.msra.mxu0 0.0
    %434 = vmatprep.subr.mxu0 0.0
    %435 = vmatpush1.msra.mxu0 0.0
    %436 = vmatprep.subr.mxu0 0.0
    %437 = vmatpush1.msra.mxu0 0.0
    %438 = vmatprep.subr.mxu0 0.0
    %439 = vmatpush1.msra.mxu0 0.0
    %440 = vmatprep.subr.mxu0 0.0
    %441 = vmatpush1.msra.mxu0 0.0
    %442 = vmatprep.mubr.f32.mxu0 0.0
    %443 = vmatmul.mubr.f32.gmra.mrb[0].mxu0 %v376
    %v444 = vpop.f32.mrb[0].mxu0
    %v445 = vadd.f32 %v300, %v444
    %v446 = vpop.f32.mrb[0].mxu0
    %v447 = vadd.f32 %v302, %v446
    %448 = vdwg.mxu0
    %449 = vmatprep.subr.mxu0 0.0
    %450 = vmatpush1.msra.mxu0 %v169
    %451 = vmatprep.subr.mxu0 0.0
    %452 = vmatpush1.msra.mxu0 %v172
    %453 = vmatprep.subr.mxu0 0.0
    %454 = vmatpush1.msra.mxu0 %v175
    %455 = vmatprep.subr.mxu0 0.0
    %456 = vmatpush1.msra.mxu0 %v178
    %457 = vmatprep.subr.mxu0 0.0
    %458 = vmatpush1.msra.mxu0 %v181
    %459 = vmatprep.subr.mxu0 0.0
    %460 = vmatpush1.msra.mxu0 %v184
    %461 = vmatprep.subr.mxu0 0.0
    %462 = vmatpush1.msra.mxu0 0.0
    %463 = vmatprep.subr.mxu0 0.0
    %464 = vmatpush1.msra.mxu0 0.0
    %465 = vmatprep.subr.mxu0 0.0
    %466 = vmatpush1.msra.mxu0 0.0
    %467 = vmatprep.subr.mxu0 0.0
    %468 = vmatpush1.msra.mxu0 0.0
    %469 = vmatprep.subr.mxu0 0.0
    %470 = vmatpush1.msra.mxu0 0.0
    %471 = vmatprep.subr.mxu0 0.0
    %472 = vmatpush1.msra.mxu0 0.0
    %473 = vmatprep.subr.mxu0 0.0
    %474 = vmatpush1.msra.mxu0 0.0
    %475 = vmatprep.subr.mxu0 0.0
    %476 = vmatpush1.msra.mxu0 0.0
    %477 = vmatprep.subr.mxu0 0.0
    %478 = vmatpush1.msra.mxu0 0.0
    %479 = vmatprep.subr.mxu0 0.0
    %480 = vmatpush1.msra.mxu0 0.0
    %481 = vmatprep.subr.mxu0 0.0
    %482 = vmatpush1.msra.mxu0 0.0
    %483 = vmatprep.subr.mxu0 0.0
    %484 = vmatpush1.msra.mxu0 0.0
    %485 = vmatprep.subr.mxu0 0.0
    %486 = vmatpush1.msra.mxu0 0.0
    %487 = vmatprep.subr.mxu0 0.0
    %488 = vmatpush1.msra.mxu0 0.0
    %489 = vmatprep.subr.mxu0 0.0
    %490 = vmatpush1.msra.mxu0 0.0
    %491 = vmatprep.subr.mxu0 0.0
    %492 = vmatpush1.msra.mxu0 0.0
    %493 = vmatprep.subr.mxu0 0.0
    %494 = vmatpush1.msra.mxu0 0.0
    %495 = vmatprep.subr.mxu0 0.0
    %496 = vmatpush1.msra.mxu0 0.0
    %497 = vmatprep.subr.mxu0 0.0
    %498 = vmatpush1.msra.mxu0 0.0
    %499 = vmatprep.subr.mxu0 0.0
    %500 = vmatpush1.msra.mxu0 0.0
    %501 = vmatprep.subr.mxu0 0.0
    %502 = vmatpush1.msra.mxu0 0.0
    %503 = vmatprep.subr.mxu0 0.0
    %504 = vmatpush1.msra.mxu0 0.0
    %505 = vmatprep.subr.mxu0 0.0
    %506 = vmatpush1.msra.mxu0 0.0
    %507 = vmatprep.subr.mxu0 0.0
    %508 = vmatpush1.msra.mxu0 0.0
    %509 = vmatprep.subr.mxu0 0.0
    %510 = vmatpush1.msra.mxu0 0.0
    %511 = vmatprep.subr.mxu0 0.0
    %512 = vmatpush1.msra.mxu0 0.0
    %513 = vmatprep.mubr.f32.mxu0 0.0
    %514 = vmatmul.mubr.f32.gmra.mrb[0].mxu0 %v376
    %v515 = vpop.f32.mrb[0].mxu0
    %v516 = vadd.f32 %v371, %v515
    %v517 = vpop.f32.mrb[0].mxu0
    %518 = vdwg.mxu0
    %v519 = vld [vmem:[%s8] sm:$0x7]
    %v521 = vlaneseq
    %v522 = vshrl.u32 %v521, 7
    %v523 = vsub.s32 0, %v522
    %v524 = vrot.slane %v519, %v523
    %v525 = vlaneseq
    %v526 = vshrl.u32 %v525, 7
    %v527 = vsub.s32 1, %v526
    %v528 = vrot.slane %v519, %v527
    %v529 = vlaneseq
    %v530 = vshrl.u32 %v529, 7
    %v531 = vsub.s32 2, %v530
    %v532 = vrot.slane %v519, %v531
    %v536 = vadd.f32 %v445, %v524
    %v537 = vadd.f32 %v447, %v528
    %v538 = vadd.f32 %v516, %v532
    %v539 = vld [vmem:[#allocation7] sm:$0xff]
    %v540 = vld [vmem:[#allocation7 + $0x8] sm:$0xff]
    %v541 = vld [vmem:[#allocation7 + $0x10] sm:$0xff]
    %v542 = vld [vmem:[#allocation7 + $0x18] sm:$0xff]
    %v543 = vld [vmem:[#allocation7 + $0x20] sm:$0xff]
    %v544 = vld [vmem:[#allocation7 + $0x28] sm:$0xff]
    %v545 = vld [vmem:[#allocation7 + $0x30] sm:$0xff]
    %v546 = vld [vmem:[#allocation7 + $0x38] sm:$0xff]
    %v547 = vld [vmem:[#allocation7 + $0x40] sm:$0xff]
    %v548 = vld [vmem:[#allocation7 + $0x48] sm:$0xff]
    %v549 = vld [vmem:[#allocation7 + $0x50] sm:$0xff]
    %v550 = vld [vmem:[#allocation7 + $0x58] sm:$0xff]
    %v551 = vld [vmem:[#allocation7 + $0x60] sm:$0xff]
    %v552 = vld [vmem:[#allocation7 + $0x68] sm:$0xff]
    %v553 = vld [vmem:[#allocation7 + $0x70] sm:$0xff]
    %v554 = vld [vmem:[#allocation7 + $0x78] sm:$0xff]
    %v555 = vld [vmem:[#allocation7 + $0x80] sm:$0xff]
    %v556 = vld [vmem:[#allocation7 + $0x88] sm:$0xff]
    %v557 = vld [vmem:[#allocation7 + $0x90] sm:$0xff]
    %v558 = vld [vmem:[#allocation7 + $0x98] sm:$0xff]
    %v559 = vld [vmem:[#allocation7 + $0xa0] sm:$0xff]
    %v560 = vld [vmem:[#allocation7 + $0xa8] sm:$0xff]
    %v561 = vld [vmem:[#allocation7 + $0xb0] sm:$0xff]
    %v562 = vld [vmem:[#allocation7 + $0xb8] sm:$0xff]
    %v563 = vld [vmem:[#allocation7 + $0xc0] sm:$0xff]
    %v564 = vld [vmem:[#allocation7 + $0xc8] sm:$0xff]
    %v565 = vld [vmem:[#allocation7 + $0xd0] sm:$0xff]
    %v566 = vld [vmem:[#allocation7 + $0xd8] sm:$0xff]
    %v567 = vld [vmem:[#allocation7 + $0xe0] sm:$0xff]
    %v568 = vld [vmem:[#allocation7 + $0xe8] sm:$0xff]
    %v569 = vld [vmem:[#allocation7 + $0xf0] sm:$0xff]
    %v570 = vld [vmem:[#allocation7 + $0xf8] sm:$0xff]
    %v571 = vld [vmem:[#allocation7 + $0x100] sm:$0xff]
    %v572 = vld [vmem:[#allocation7 + $0x108] sm:$0xff]
    %v573 = vld [vmem:[#allocation7 + $0x110] sm:$0xff]
    %v574 = vld [vmem:[#allocation7 + $0x118] sm:$0xff]
    %v575 = vld [vmem:[#allocation7 + $0x120] sm:$0xff]
    %v576 = vld [vmem:[#allocation7 + $0x128] sm:$0xff]
    %v577 = vld [vmem:[#allocation7 + $0x130] sm:$0xff]
    %v578 = vld [vmem:[#allocation7 + $0x138] sm:$0xff]
    %v579 = vld [vmem:[#allocation7 + $0x140] sm:$0xff]
    %v580 = vld [vmem:[#allocation7 + $0x148] sm:$0xff]
    %v581 = vld [vmem:[#allocation7 + $0x150] sm:$0xff]
    %v582 = vld [vmem:[#allocation7 + $0x158] sm:$0xff]
    %v583 = vld [vmem:[#allocation7 + $0x160] sm:$0xff]
    %v584 = vld [vmem:[#allocation7 + $0x168] sm:$0xff]
    %v585 = vld [vmem:[#allocation7 + $0x170] sm:$0xff]
    %v586 = vld [vmem:[#allocation7 + $0x178] sm:$0xff]
    %v587 = vld [vmem:[%s9] sm:$0x7]
    %v589 = vlaneseq
    %v590 = vshrl.u32 %v589, 7
    %v591 = vsub.s32 0, %v590
    %v592 = vrot.slane %v587, %v591
    %v593 = vlaneseq
    %v594 = vshrl.u32 %v593, 7
    %v595 = vsub.s32 1, %v594
    %v596 = vrot.slane %v587, %v595
    %v597 = vlaneseq
    %v598 = vshrl.u32 %v597, 7
    %v599 = vsub.s32 2, %v598
    %v600 = vrot.slane %v587, %v599
    %604 = vmatprep.subr.mxu0 %v540
    %605 = vmatpush1.msra.mxu0 %v539
    %606 = vmatprep.subr.mxu0 %v543
    %607 = vmatpush1.msra.mxu0 %v542
    %608 = vmatprep.subr.mxu0 %v546
    %609 = vmatpush1.msra.mxu0 %v545
    %610 = vmatprep.subr.mxu0 %v549
    %611 = vmatpush1.msra.mxu0 %v548
    %612 = vmatprep.subr.mxu0 %v552
    %613 = vmatpush1.msra.mxu0 %v551
    %614 = vmatprep.subr.mxu0 %v555
    %615 = vmatpush1.msra.mxu0 %v554
    %616 = vmatprep.subr.mxu0 %v558
    %617 = vmatpush1.msra.mxu0 %v557
    %618 = vmatprep.subr.mxu0 %v561
    %619 = vmatpush1.msra.mxu0 %v560
    %620 = vmatprep.subr.mxu0 %v564
    %621 = vmatpush1.msra.mxu0 %v563
    %622 = vmatprep.subr.mxu0 %v567
    %623 = vmatpush1.msra.mxu0 %v566
    %624 = vmatprep.subr.mxu0 %v570
    %625 = vmatpush1.msra.mxu0 %v569
    %626 = vmatprep.subr.mxu0 %v573
    %627 = vmatpush1.msra.mxu0 %v572
    %628 = vmatprep.subr.mxu0 %v576
    %629 = vmatpush1.msra.mxu0 %v575
    %630 = vmatprep.subr.mxu0 %v579
    %631 = vmatpush1.msra.mxu0 %v578
    %632 = vmatprep.subr.mxu0 %v582
    %633 = vmatpush1.msra.mxu0 %v581
    %634 = vmatprep.subr.mxu0 %v585
    %635 = vmatpush1.msra.mxu0 %v584
    %636 = vmatprep.subr.mxu0 0.0
    %637 = vmatpush1.msra.mxu0 0.0
    %638 = vmatprep.subr.mxu0 0.0
    %639 = vmatpush1.msra.mxu0 0.0
    %640 = vmatprep.subr.mxu0 0.0
    %641 = vmatpush1.msra.mxu0 0.0
    %642 = vmatprep.subr.mxu0 0.0
    %643 = vmatpush1.msra.mxu0 0.0
    %644 = vmatprep.subr.mxu0 0.0
    %645 = vmatpush1.msra.mxu0 0.0
    %646 = vmatprep.subr.mxu0 0.0
    %647 = vmatpush1.msra.mxu0 0.0
    %648 = vmatprep.subr.mxu0 0.0
    %649 = vmatpush1.msra.mxu0 0.0
    %650 = vmatprep.subr.mxu0 0.0
    %651 = vmatpush1.msra.mxu0 0.0
    %652 = vmatprep.subr.mxu0 0.0
    %653 = vmatpush1.msra.mxu0 0.0
    %654 = vmatprep.subr.mxu0 0.0
    %655 = vmatpush1.msra.mxu0 0.0
    %656 = vmatprep.subr.mxu0 0.0
    %657 = vmatpush1.msra.mxu0 0.0
    %658 = vmatprep.subr.mxu0 0.0
    %659 = vmatpush1.msra.mxu0 0.0
    %660 = vmatprep.subr.mxu0 0.0
    %661 = vmatpush1.msra.mxu0 0.0
    %662 = vmatprep.subr.mxu0 0.0
    %663 = vmatpush1.msra.mxu0 0.0
    %664 = vmatprep.subr.mxu0 0.0
    %665 = vmatpush1.msra.mxu0 0.0
    %666 = vmatprep.subr.mxu0 0.0
    %667 = vmatpush1.msra.mxu0 0.0
    %668 = vmatprep.mubr.f32.mxu0 0.0
    %669 = vmatmul.mubr.f32.gmra.mrb[0].mxu0 %v82
    %v670 = vpop.f32.mrb[0].mxu0
    %v671 = vadd.f32 %v592, %v670
    %v672 = vpop.f32.mrb[0].mxu0
    %v673 = vadd.f32 %v596, %v672
    %674 = vdwg.mxu0
    %675 = vmatprep.subr.mxu0 0.0
    %676 = vmatpush1.msra.mxu0 %v541
    %677 = vmatprep.subr.mxu0 0.0
    %678 = vmatpush1.msra.mxu0 %v544
    %679 = vmatprep.subr.mxu0 0.0
    %680 = vmatpush1.msra.mxu0 %v547
    %681 = vmatprep.subr.mxu0 0.0
    %682 = vmatpush1.msra.mxu0 %v550
    %683 = vmatprep.subr.mxu0 0.0
    %684 = vmatpush1.msra.mxu0 %v553
    %685 = vmatprep.subr.mxu0 0.0
    %686 = vmatpush1.msra.mxu0 %v556
    %687 = vmatprep.subr.mxu0 0.0
    %688 = vmatpush1.msra.mxu0 %v559
    %689 = vmatprep.subr.mxu0 0.0
    %690 = vmatpush1.msra.mxu0 %v562
    %691 = vmatprep.subr.mxu0 0.0
    %692 = vmatpush1.msra.mxu0 %v565
    %693 = vmatprep.subr.mxu0 0.0
    %694 = vmatpush1.msra.mxu0 %v568
    %695 = vmatprep.subr.mxu0 0.0
    %696 = vmatpush1.msra.mxu0 %v571
    %697 = vmatprep.subr.mxu0 0.0
    %698 = vmatpush1.msra.mxu0 %v574
    %699 = vmatprep.subr.mxu0 0.0
    %700 = vmatpush1.msra.mxu0 %v577
    %701 = vmatprep.subr.mxu0 0.0
    %702 = vmatpush1.msra.mxu0 %v580
    %703 = vmatprep.subr.mxu0 0.0
    %704 = vmatpush1.msra.mxu0 %v583
    %705 = vmatprep.subr.mxu0 0.0
    %706 = vmatpush1.msra.mxu0 %v586
    %707 = vmatprep.subr.mxu0 0.0
    %708 = vmatpush1.msra.mxu0 0.0
    %709 = vmatprep.subr.mxu0 0.0
    %710 = vmatpush1.msra.mxu0 0.0
    %711 = vmatprep.subr.mxu0 0.0
    %712 = vmatpush1.msra.mxu0 0.0
    %713 = vmatprep.subr.mxu0 0.0
    %714 = vmatpush1.msra.mxu0 0.0
    %715 = vmatprep.subr.mxu0 0.0
    %716 = vmatpush1.msra.mxu0 0.0
    %717 = vmatprep.subr.mxu0 0.0
    %718 = vmatpush1.msra.mxu0 0.0
    %719 = vmatprep.subr.mxu0 0.0
    %720 = vmatpush1.msra.mxu0 0.0
    %721 = vmatprep.subr.mxu0 0.0
    %722 = vmatpush1.msra.mxu0 0.0
    %723 = vmatprep.subr.mxu0 0.0
    %724 = vmatpush1.msra.mxu0 0.0
    %725 = vmatprep.subr.mxu0 0.0
    %726 = vmatpush1.msra.mxu0 0.0
    %727 = vmatprep.subr.mxu0 0.0
    %728 = vmatpush1.msra.mxu0 0.0
    %729 = vmatprep.subr.mxu0 0.0
    %730 = vmatpush1.msra.mxu0 0.0
    %731 = vmatprep.subr.mxu0 0.0
    %732 = vmatpush1.msra.mxu0 0.0
    %733 = vmatprep.subr.mxu0 0.0
    %734 = vmatpush1.msra.mxu0 0.0
    %735 = vmatprep.subr.mxu0 0.0
    %736 = vmatpush1.msra.mxu0 0.0
    %737 = vmatprep.subr.mxu0 0.0
    %738 = vmatpush1.msra.mxu0 0.0
    %739 = vmatprep.mubr.f32.mxu0 0.0
    %740 = vmatmul.mubr.f32.gmra.mrb[0].mxu0 %v82
    %v741 = vpop.f32.mrb[0].mxu0
    %v742 = vadd.f32 %v600, %v741
    %v743 = vpop.f32.mrb[0].mxu0
    %744 = vdwg.mxu0
    %v745 = vadd.f32 %v536, %v671
    %v746 = vxor.u32 %v745, 2147483648
    %v747 = vmul.f32 %v746, 1.442695
    %v748 = vpow.pop %v747
    %v749 = vadd.f32 %v748, 1.0
    %v750 = vrcp.pop %v749
    %v751 = vmul.f32 1.0, %v750
    %v752 = vadd.f32 %v537, %v673
    %v753 = vxor.u32 %v752, 2147483648
    %v754 = vmul.f32 %v753, 1.442695
    %v755 = vpow.pop %v754
    %v756 = vadd.f32 %v755, 1.0
    %v757 = vrcp.pop %v756
    %v758 = vmul.f32 1.0, %v757
    %v759 = vmul.f32 %v751, %v742
    %v760 = vadd.f32 %v538, %v759
    %v761 = vtanh.pop %v760
    %v762 = vsub.f32 %v82, %v761
    %v763 = vmul.f32 %v758, %v762
    %v764 = vadd.f32 %v761, %v763
    %765 = vst [vmem:[#allocation8] sm:$0xff] %v166
    %766 = vst [vmem:[#allocation9] sm:$0xff] %v764
    // Predicated region
    $region54: #{vrnn_deterministic_transition.1} parent=1 // pred_check
      _
    $region55: #{vrnn_deterministic_transition.1} parent=1 // pred_check_branch
      %768 = sbr.rel (0) target = $region57
    $region56: #{vrnn_deterministic_transition.1} parent=1 // pred_region
      %s770 = ssub.s32 128, 128
      %771 = vsyncadd [#allocation4], %s770
      %s773 = sshll.u32 [#allocation8], 4
      %s774 = int_to_ptr.vmem [resolvable:$true] %s773
      %776 = dma.vmem_to_hbm [thread:$0]  %s774, 128, %s10, [#allocation4]
    $region57: #{vrnn_deterministic_transition.1} parent=1 // pred_fallthru
      _
    // Predicated region
    $region58: #{vrnn_deterministic_transition.1} parent=1 // pred_check
      _
    $region59: #{vrnn_deterministic_transition.1} parent=1 // pred_check_branch
      %778 = sbr.rel (0) target = $region61
    $region60: #{vrnn_deterministic_transition.1} parent=1 // pred_region
      %s780 = ssub.s32 128, 128
      %781 = vsyncadd [#allocation10], %s780
      %s783 = sshll.u32 [#allocation9], 4
      %s784 = int_to_ptr.vmem [resolvable:$true] %s783
      %786 = dma.vmem_to_hbm [thread:$0]  %s784, 128, %s11, [#allocation10]
    $region61: #{vrnn_deterministic_transition.1} parent=1 // pred_fallthru
      _
    // Predicated region
    $region62: #{vrnn_deterministic_transition.1} parent=1 // pred_check
      _
    $region63: #{vrnn_deterministic_transition.1} parent=1 // pred_check_branch
      %788 = sbr.rel (0) target = $region65
    $region64: #{vrnn_deterministic_transition.1} parent=1 // pred_region
      %789 = dma.done [#allocation4], 128
    $region65: #{vrnn_deterministic_transition.1} parent=1 // pred_fallthru
      _
    // Predicated region
    $region66: #{vrnn_deterministic_transition.1} parent=1 // pred_check
      _
    $region67: #{vrnn_deterministic_transition.1} parent=1 // pred_check_branch
      %791 = sbr.rel (0) target = $region69
    $region68: #{vrnn_deterministic_transition.1} parent=1 // pred_region
      %792 = dma.done [#allocation10], 128
    $region69: #{vrnn_deterministic_transition.1} parent=1 // pred_fallthru
      _
    %793 = vsyncpa [#allocation3], 1
    %794 = vsyncpa [#allocation6], 1
    %795 = vsyncpa [#allocation4], 1
    %796 = vsyncpa [#allocation10], 1

</llo_original>
